<compile_context>
chip_gen: v5e
topology: v5e:2x2
jax: 0.10.0
libtpu: 0.0.40
codegen_flags: <defaults>
</compile_context>

<pallas_src>
import jax
import jax.numpy as jnp
from jax import lax
from jax.experimental import pallas as pl
from jax.experimental.pallas import tpu as pltpu

LANE = 128      # f32 lane width
SUBLANE = 8     # f32 sublane count
HID1, HID2 = 30, 20


def _round_up(x, m):
    return (x + m - 1) // m * m


def _cdiv(a, b):
    return -(-a // b)


def mlp_kernel(x_ref, w1_ref, b1_ref, w2_ref, b2_ref, w3_ref, b3_ref, o_ref):
    # x:  (TB, num_inputs) f32          w1: (num_inputs, 128)  b1: (1, 128)
    # w2: (128, 128)                    b2: (1, 128)
    # w3: (8, 128)  PyTorch (out, in)   b3: (8, 1)
    # o:  (num_outputs, TB)  -- batch on the lane axis (lane-dense stores)
    x = x_ref[...]

    h1 = jnp.dot(x, w1_ref[...], preferred_element_type=jnp.float32) + b1_ref[...]
    h1 = jnp.maximum(h1, 0.0)                       # ReLU (VPU)

    h2 = jnp.dot(h1, w2_ref[...], preferred_element_type=jnp.float32) + b2_ref[...]
    h2 = jnp.maximum(h2, 0.0)                       # ReLU (VPU)

    # Final layer batch-major: out_t[o, b] = sum_k W3[o, k] * h2[b, k]   (A @ B^T on MXU)
    out_t = lax.dot_general(
        w3_ref[...], h2,
        dimension_numbers=(((1,), (1,)), ((), ())),
        preferred_element_type=jnp.float32) + b3_ref[...]          # (8, TB)

    o_ref[...] = out_t[: o_ref.shape[0], :].astype(o_ref.dtype)


def _choose_tile(B):
    """Pick (TB, grid_steps).  Keeps >=2 'parallel' steps once B is large (v7x
    megacore), TB a multiple of 128 when tiling (lane-dense output blocks), and
    avoids round_up(B, TB)-style padding waste by allowing a partial last block."""
    TB_MAX = 2048                        # ~400 KiB f32 x-tile; VMEM-safe on every generation
    if B < 256:
        return B, 1                      # single exact block (block dims == array dims)
    n_steps = max(2, _cdiv(B, TB_MAX))   # >=2 steps so v7x uses both TensorCores
    tb = _round_up(_cdiv(B, n_steps), LANE)
    return tb, _cdiv(B, tb)


def mlp_forward(x, padded_params, num_outputs):
    """x: (B, num_inputs) f32.  Returns (B, num_outputs) f32 (same as the PyTorch module)."""
    w1, b1 = padded_params["w1"], padded_params["b1"]
    w2, b2 = padded_params["w2"], padded_params["b2"]
    w3, b3 = padded_params["w3"], padded_params["b3"]

    B, num_inputs = x.shape
    TB, grid = _choose_tile(B)

    # Advisory cost: tiny FLOPs, bandwidth/overhead dominated.  Bytes = what we actually DMA.
    flops = 2 * B * (num_inputs * HID1 + HID1 * HID2 + HID2 * num_outputs)
    param_bytes = sum(int(p.size) * p.dtype.itemsize for p in (w1, b1, w2, b2, w3, b3))
    bytes_accessed = B * num_inputs * 4 + B * num_outputs * 4 + param_bytes
    cost = pl.CostEstimate(flops=flops, transcendentals=0, bytes_accessed=bytes_accessed)

    def const_spec(arr):
        # Weights / biases: whole array as one block, VMEM-resident across grid steps.
        return pl.BlockSpec(arr.shape, lambda i: (0, 0))

    out_t = pl.pallas_call(
        mlp_kernel,
        out_shape=jax.ShapeDtypeStruct((num_outputs, B), jnp.float32),
        grid=(grid,),
        in_specs=[
            pl.BlockSpec((TB, num_inputs), lambda i: (i, 0)),    # x tiled over batch rows
            const_spec(w1), const_spec(b1),
            const_spec(w2), const_spec(b2),
            const_spec(w3), const_spec(b3),
        ],
        out_specs=pl.BlockSpec((num_outputs, TB), lambda i: (0, i)),  # batch-major, lane-dense
        compiler_params=pltpu.CompilerParams(
            dimension_semantics=("parallel",)),                  # megacore sharding on v7x
        cost_estimate=cost,
    )(x, w1, b1, w2, b2, w3, b3)

    # Only a tiny (num_outputs, B) transpose remains in the wrapper.
    return out_t.T


def init_params(key, num_inputs, num_outputs):
    """PyTorch nn.Linear-style U(-1/sqrt(fan_in), +1/sqrt(fan_in)) init.

    Returns (padded_params, raw_params).  Padded layouts (zero-filled pads):
      w1: (num_inputs, 128)  real (num_inputs, 30)   [(in, out)]
      w2: (128, 128)         real (30, 20)           [(in, out)]
      w3: (8, 128)           real (num_outputs, 20)  [(out, in), PyTorch layout]
      b1/b2: (1, 128);  b3: (8, 1)."""
    raw = {}
    dims = [(num_inputs, HID1), (HID1, HID2), (HID2, num_outputs)]
    for i, (fi, fo) in enumerate(dims, start=1):
        key, kw, kb = jax.random.split(key, 3)
        bound = 1.0 / (fi ** 0.5)
        raw[f"w{i}"] = jax.random.uniform(kw, (fi, fo), jnp.float32, minval=-bound, maxval=bound)
        raw[f"b{i}"] = jax.random.uniform(kb, (1, fo), jnp.float32, minval=-bound, maxval=bound)

    out_pad = _round_up(num_outputs, SUBLANE)
    padded = {
        "w1": jnp.zeros((num_inputs, LANE), jnp.float32).at[:, :HID1].set(raw["w1"]),
        "b1": jnp.zeros((1, LANE), jnp.float32).at[:, :HID1].set(raw["b1"]),
        "w2": jnp.zeros((LANE, LANE), jnp.float32).at[:HID1, :HID2].set(raw["w2"]),
        "b2": jnp.zeros((1, LANE), jnp.float32).at[:, :HID2].set(raw["b2"]),
        "w3": jnp.zeros((out_pad, LANE), jnp.float32).at[:num_outputs, :HID2].set(raw["w3"].T),
        "b3": jnp.zeros((out_pad, 1), jnp.float32).at[:num_outputs, 0].set(raw["b3"][0]),
    }
    return padded, raw


def _ref_forward(x, raw):
    h1 = jnp.maximum(x @ raw["w1"] + raw["b1"], 0.0)
    h2 = jnp.maximum(h1 @ raw["w2"] + raw["b2"], 0.0)
    return h2 @ raw["w3"] + raw["b3"]


if __name__ == "__main__":
    num_inputs, num_outputs = 50, 3

    key = jax.random.PRNGKey(0)
    key, kx = jax.random.split(key)
    padded_params, raw_params = init_params(key, num_inputs, num_outputs)

    # Primary small case (matches the module spec's tiny input).
    batch = 2
    x = jax.random.normal(kx, (batch, num_inputs), jnp.float32)
    out = mlp_forward(x, padded_params, num_outputs)
    jax.block_until_ready(out)
    ref = _ref_forward(x, raw_params)
    assert out.shape == (batch, num_outputs)
    assert jnp.allclose(out, ref, atol=1e-5, rtol=1e-5)

    # Second case exercises the multi-step "parallel" grid with a partial last block.
    key, kx2 = jax.random.split(key)
    x2 = jax.random.normal(kx2, (300, num_inputs), jnp.float32)
    out2 = mlp_forward(x2, padded_params, num_outputs)
    jax.block_until_ready(out2)
    ref2 = _ref_forward(x2, raw_params)
    assert out2.shape == (300, num_outputs)
    assert jnp.allclose(out2, ref2, atol=1e-5, rtol=1e-5)

    print("KERNEL_OK")
</pallas_src>

<mosaic_0001>
module attributes {stable_mosaic.version = 11 : i64} {
  func.func @mlp_kernel(%arg0: i32, %arg1: memref<2x50xf32, #tpu.memory_space<vmem>>, %arg2: memref<50x128xf32, #tpu.memory_space<vmem>>, %arg3: memref<1x128xf32, #tpu.memory_space<vmem>>, %arg4: memref<128x128xf32, #tpu.memory_space<vmem>>, %arg5: memref<1x128xf32, #tpu.memory_space<vmem>>, %arg6: memref<8x128xf32, #tpu.memory_space<vmem>>, %arg7: memref<8x1xf32, #tpu.memory_space<vmem>>, %arg8: memref<3x2xf32, #tpu.memory_space<vmem>>) attributes {dimension_semantics = [#tpu.dimension_semantics<parallel>], iteration_bounds = array<i64: 1>, scalar_prefetch = 0 : i64, scratch_operands = 0 : i64, tpu.core_type = #tpu.core_type<tc>, window_params = [{transform_indices = @transform_0, window_bounds = array<i64: 2, 50>}, {pipeline_mode = #tpu.pipeline_mode<synchronous>, transform_indices = @transform_1, window_bounds = array<i64: 50, 128>}, {pipeline_mode = #tpu.pipeline_mode<synchronous>, transform_indices = @transform_2, window_bounds = array<i64: 1, 128>}, {pipeline_mode = #tpu.pipeline_mode<synchronous>, transform_indices = @transform_3, window_bounds = array<i64: 128, 128>}, {pipeline_mode = #tpu.pipeline_mode<synchronous>, transform_indices = @transform_4, window_bounds = array<i64: 1, 128>}, {pipeline_mode = #tpu.pipeline_mode<synchronous>, transform_indices = @transform_5, window_bounds = array<i64: 8, 128>}, {pipeline_mode = #tpu.pipeline_mode<synchronous>, transform_indices = @transform_6, window_bounds = array<i64: 8, 1>}, {transform_indices = @transform_7, window_bounds = array<i64: 3, 2>}]} {
    %c0 = arith.constant 0 : index
    %c0_0 = arith.constant 0 : index
    %0 = vector.load %arg1[%c0, %c0_0] : memref<2x50xf32, #tpu.memory_space<vmem>>, vector<2x50xf32>
    %c0_1 = arith.constant 0 : index
    %c0_2 = arith.constant 0 : index
    %1 = vector.load %arg2[%c0_1, %c0_2] : memref<50x128xf32, #tpu.memory_space<vmem>>, vector<50x128xf32>
    %cst = arith.constant dense<0.000000e+00> : vector<2x128xf32>
    %2 = tpu.matmul %0, %1, %cst {dimension_numbers = #tpu.dot_dimension_numbers<[1], [0], [0], [1], [0, 0, 1, 1], [], []>} : vector<2x50xf32>, vector<50x128xf32>, vector<2x128xf32> -> vector<2x128xf32>
    %c0_3 = arith.constant 0 : index
    %c0_4 = arith.constant 0 : index
    %3 = vector.load %arg3[%c0_3, %c0_4] : memref<1x128xf32, #tpu.memory_space<vmem>>, vector<1x128xf32>
    %4 = vector.broadcast %3 : vector<1x128xf32> to vector<2x128xf32>
    %5 = arith.addf %2, %4 : vector<2x128xf32>
    %cst_5 = arith.constant 0.000000e+00 : f32
    %6 = vector.broadcast %cst_5 : f32 to vector<2x128xf32>
    %7 = arith.maximumf %5, %6 : vector<2x128xf32>
    %c0_6 = arith.constant 0 : index
    %c0_7 = arith.constant 0 : index
    %8 = vector.load %arg4[%c0_6, %c0_7] : memref<128x128xf32, #tpu.memory_space<vmem>>, vector<128x128xf32>
    %cst_8 = arith.constant dense<0.000000e+00> : vector<2x128xf32>
    %9 = tpu.matmul %7, %8, %cst_8 {dimension_numbers = #tpu.dot_dimension_numbers<[1], [0], [0], [1], [0, 0, 1, 1], [], []>} : vector<2x128xf32>, vector<128x128xf32>, vector<2x128xf32> -> vector<2x128xf32>
    %c0_9 = arith.constant 0 : index
    %c0_10 = arith.constant 0 : index
    %10 = vector.load %arg5[%c0_9, %c0_10] : memref<1x128xf32, #tpu.memory_space<vmem>>, vector<1x128xf32>
    %11 = vector.broadcast %10 : vector<1x128xf32> to vector<2x128xf32>
    %12 = arith.addf %9, %11 : vector<2x128xf32>
    %cst_11 = arith.constant 0.000000e+00 : f32
    %13 = vector.broadcast %cst_11 : f32 to vector<2x128xf32>
    %14 = arith.maximumf %12, %13 : vector<2x128xf32>
    %c0_12 = arith.constant 0 : index
    %c0_13 = arith.constant 0 : index
    %15 = vector.load %arg6[%c0_12, %c0_13] : memref<8x128xf32, #tpu.memory_space<vmem>>, vector<8x128xf32>
    %cst_14 = arith.constant dense<0.000000e+00> : vector<8x2xf32>
    %16 = tpu.matmul %15, %14, %cst_14 {dimension_numbers = #tpu.dot_dimension_numbers<[1], [1], [0], [0], [0, 0, 1, 0], [], []>} : vector<8x128xf32>, vector<2x128xf32>, vector<8x2xf32> -> vector<8x2xf32>
    %c0_15 = arith.constant 0 : index
    %c0_16 = arith.constant 0 : index
    %17 = vector.load %arg7[%c0_15, %c0_16] : memref<8x1xf32, #tpu.memory_space<vmem>>, vector<8x1xf32>
    %18 = vector.broadcast %17 : vector<8x1xf32> to vector<8x2xf32>
    %19 = arith.addf %16, %18 : vector<8x2xf32>
    %20 = vector.extract_strided_slice %19 {offsets = [0, 0], sizes = [3, 2], strides = [1, 1]} : vector<8x2xf32> to vector<3x2xf32>
    %c0_17 = arith.constant 0 : index
    %c0_18 = arith.constant 0 : index
    %21 = vector.load %arg8[%c0_17, %c0_18] : memref<3x2xf32, #tpu.memory_space<vmem>>, vector<3x2xf32>
    tpu.vector_store %arg8[%c0_17, %c0_18], %20 {strides = array<i32>} : memref<3x2xf32, #tpu.memory_space<vmem>>, vector<3x2xf32>,
    return
  }
  func.func @transform_0(%arg0: i32) -> (i32, i32) {
    %c0_i32 = arith.constant 0 : i32
    %c0_i32_0 = arith.constant 0 : i32
    return %arg0, %c0_i32 : i32, i32
  }
  func.func @transform_1(%arg0: i32) -> (i32, i32) {
    %c0_i32 = arith.constant 0 : i32
    %c0_i32_0 = arith.constant 0 : i32
    %c0_i32_1 = arith.constant 0 : i32
    return %c0_i32, %c0_i32_0 : i32, i32
  }
  func.func @transform_2(%arg0: i32) -> (i32, i32) {
    %c0_i32 = arith.constant 0 : i32
    %c0_i32_0 = arith.constant 0 : i32
    %c0_i32_1 = arith.constant 0 : i32
    return %c0_i32, %c0_i32_0 : i32, i32
  }
  func.func @transform_3(%arg0: i32) -> (i32, i32) {
    %c0_i32 = arith.constant 0 : i32
    %c0_i32_0 = arith.constant 0 : i32
    %c0_i32_1 = arith.constant 0 : i32
    return %c0_i32, %c0_i32_0 : i32, i32
  }
  func.func @transform_4(%arg0: i32) -> (i32, i32) {
    %c0_i32 = arith.constant 0 : i32
    %c0_i32_0 = arith.constant 0 : i32
    %c0_i32_1 = arith.constant 0 : i32
    return %c0_i32, %c0_i32_0 : i32, i32
  }
  func.func @transform_5(%arg0: i32) -> (i32, i32) {
    %c0_i32 = arith.constant 0 : i32
    %c0_i32_0 = arith.constant 0 : i32
    %c0_i32_1 = arith.constant 0 : i32
    return %c0_i32, %c0_i32_0 : i32, i32
  }
  func.func @transform_6(%arg0: i32) -> (i32, i32) {
    %c0_i32 = arith.constant 0 : i32
    %c0_i32_0 = arith.constant 0 : i32
    %c0_i32_1 = arith.constant 0 : i32
    return %c0_i32, %c0_i32_0 : i32, i32
  }
  func.func @transform_7(%arg0: i32) -> (i32, i32) {
    %c0_i32 = arith.constant 0 : i32
    %c0_i32_0 = arith.constant 0 : i32
    return %c0_i32, %arg0 : i32, i32
  }
}

</mosaic_0001>

<llo_original>
// kernel: tpu_custom_call.1
$region0: #{tpu_custom_call.1}
  #allocation0 [shape = 'u32[]', space=smem, size = 0x4, offset = 0x4, fixed_abs, tag = 'smem constant byte address 0x4 - core index']
  #allocation1 [shape = 'u32[72,128]{1,0:T(1,128)}', space=vmem, size = 0x9000, scoped, tag = 'internal scratch']
  %s0 = inlined_call_operand.vmem [shape: f32[2,50], index: 0, kind: input, shape index: {}]
  %s1 = inlined_call_operand.hbm [shape: f32[50,128], index: 1, kind: input, shape index: {}]
  %s2 = inlined_call_operand.vmem [shape: f32[1,128], index: 2, kind: input, shape index: {}]
  %s3 = inlined_call_operand.hbm [shape: f32[128,128], index: 3, kind: input, shape index: {}]
  %s4 = inlined_call_operand.vmem [shape: f32[1,128], index: 4, kind: input, shape index: {}]
  %s5 = inlined_call_operand.vmem [shape: f32[8,128], index: 5, kind: input, shape index: {}]
  %s6 = inlined_call_operand.vmem [shape: f32[8,1], index: 6, kind: input, shape index: {}]
  %s7 = inlined_call_operand.vmem [shape: f32[3,2], index: 7, kind: output, shape index: {}]
  %s8 = sld [smem:[#allocation0]]
  $region46: #{tpu_custom_call.1} parent=0
    _
  %s10 = ssub.s32 1, %s8
  %s11 = scalar_select 0, %s10, %s8
  $region1: #{tpu_custom_call.1} parent=0
    #allocation2 [shape = 'u8[28672]{0}', space=vmem, size = 0x7000, scoped, tag = 'input window, operand 1, single buffered']
    #allocation3 [shape = 's32[1]{0}', space=sflag, size = 0x4, scoped, tag = 'scoped memory for tpu_custom_call.1']
    #allocation4 [shape = 'u8[65536]{0}', space=vmem, size = 0x10000, scoped, tag = 'input window, operand 3, single buffered']
    #allocation5 [shape = 's32[1]{0}', space=sflag, size = 0x4, scoped, tag = 'scoped memory for tpu_custom_call.1']
    %12 = vsyncpa [#allocation3], 0
    %13 = vsyncpa [#allocation5], 0
    // Predicated region
    $region2: #{tpu_custom_call.1} parent=1 // pred_check
      _
    $region3: #{tpu_custom_call.1} parent=1 // pred_check_branch
      %15 = sbr.rel (0) target = $region5
    $region4: #{tpu_custom_call.1} parent=1 // pred_region
      _
    $region5: #{tpu_custom_call.1} parent=1 // pred_fallthru
      _
    // Predicated region
    $region6: #{tpu_custom_call.1} parent=1 // pred_check
      _
    $region7: #{tpu_custom_call.1} parent=1 // pred_check_branch
      %17 = sbr.rel (0) target = $region9
    $region8: #{tpu_custom_call.1} parent=1 // pred_region
      %19 = vsyncadd [#allocation3], 0
      %s20 = sshll.u32 %s1, 4
      %s21 = int_to_ptr.hbm [resolvable:$true] %s20
      %s22 = sshll.u32 [#allocation2], 4
      %s23 = int_to_ptr.vmem [resolvable:$true] %s22
      %28 = dma.hbm_to_vmem [thread:$0]  %s21, 896, %s23, [#allocation3], 128, 128, 8
    $region9: #{tpu_custom_call.1} parent=1 // pred_fallthru
      _
    // Predicated region
    $region10: #{tpu_custom_call.1} parent=1 // pred_check
      _
    $region11: #{tpu_custom_call.1} parent=1 // pred_check_branch
      %30 = sbr.rel (0) target = $region13
    $region12: #{tpu_custom_call.1} parent=1 // pred_region
      _
    $region13: #{tpu_custom_call.1} parent=1 // pred_fallthru
      _
    // Predicated region
    $region14: #{tpu_custom_call.1} parent=1 // pred_check
      _
    $region15: #{tpu_custom_call.1} parent=1 // pred_check_branch
      %32 = sbr.rel (0) target = $region17
    $region16: #{tpu_custom_call.1} parent=1 // pred_region
      %34 = vsyncadd [#allocation5], 0
      %s35 = sshll.u32 %s3, 4
      %s36 = int_to_ptr.hbm [resolvable:$true] %s35
      %s37 = sshll.u32 [#allocation4], 4
      %s38 = int_to_ptr.vmem [resolvable:$true] %s37
      %43 = dma.hbm_to_vmem [thread:$0]  %s36, 2048, %s38, [#allocation5], 128, 128, 8
    $region17: #{tpu_custom_call.1} parent=1 // pred_fallthru
      _
    // Predicated region
    $region18: #{tpu_custom_call.1} parent=1 // pred_check
      _
    $region19: #{tpu_custom_call.1} parent=1 // pred_check_branch
      %45 = sbr.rel (0) target = $region21
    $region20: #{tpu_custom_call.1} parent=1 // pred_region
      _
    $region21: #{tpu_custom_call.1} parent=1 // pred_fallthru
      _
    // Predicated region
    $region22: #{tpu_custom_call.1} parent=1 // pred_check
      _
    $region23: #{tpu_custom_call.1} parent=1 // pred_check_branch
      %47 = sbr.rel (0) target = $region25
    $region24: #{tpu_custom_call.1} parent=1 // pred_region
      _
    $region25: #{tpu_custom_call.1} parent=1 // pred_fallthru
      _
    // Predicated region
    $region26: #{tpu_custom_call.1} parent=1 // pred_check
      _
    $region27: #{tpu_custom_call.1} parent=1 // pred_check_branch
      %49 = sbr.rel (0) target = $region29
    $region28: #{tpu_custom_call.1} parent=1 // pred_region
      _
    $region29: #{tpu_custom_call.1} parent=1 // pred_fallthru
      _
    // Predicated region
    $region30: #{tpu_custom_call.1} parent=1 // pred_check
      _
    $region31: #{tpu_custom_call.1} parent=1 // pred_check_branch
      %51 = sbr.rel (0) target = $region33
    $region32: #{tpu_custom_call.1} parent=1 // pred_region
      %53 = dma.done [#allocation3], 896
    $region33: #{tpu_custom_call.1} parent=1 // pred_fallthru
      _
    // Predicated region
    $region34: #{tpu_custom_call.1} parent=1 // pred_check
      _
    $region35: #{tpu_custom_call.1} parent=1 // pred_check_branch
      %55 = sbr.rel (0) target = $region37
    $region36: #{tpu_custom_call.1} parent=1 // pred_region
      %57 = dma.done [#allocation5], 2048
    $region37: #{tpu_custom_call.1} parent=1 // pred_fallthru
      _
    %v58 = vld [vmem:[%s0] sm:$0x3]
    %v59 = vld [vmem:[#allocation2] sm:$0xff]
    %v60 = vld [vmem:[#allocation2 + $0x8] sm:$0xff]
    %v61 = vld [vmem:[#allocation2 + $0x10] sm:$0xff]
    %v62 = vld [vmem:[#allocation2 + $0x18] sm:$0xff]
    %v63 = vld [vmem:[#allocation2 + $0x20] sm:$0xff]
    %v64 = vld [vmem:[#allocation2 + $0x28] sm:$0xff]
    %v65 = vld [vmem:[#allocation2 + $0x30] sm:$0x3]
    %v66 = vld [vmem:[%s2] sm:$0x1]
    %v68 = vperm.slane %v66, 0
    %vm70 = vcmask 408576
    %v72 = vsel %vm70, %v58, 0
    %vm74 = vcmask 1041408
    %v76 = vsel %vm74, %v65, 0
    %78 = vmatpush.msra.mxu0 0.0
    %79 = vmatpush.msra.mxu0 0.0
    %80 = vmatpush.msra.mxu0 0.0
    %81 = vmatpush.msra.mxu0 0.0
    %82 = vmatpush.msra.mxu0 0.0
    %83 = vmatpush.msra.mxu0 0.0
    %84 = vmatpush.msra.mxu0 0.0
    %85 = vmatpush.msra.mxu0 0.0
    %86 = vmatpush.msra.mxu0 0.0
    %87 = vmatpush.msra.mxu0 %v76
    %88 = vmatpush.msra.mxu0 %v64
    %89 = vmatpush.msra.mxu0 %v63
    %90 = vmatpush.msra.mxu0 %v62
    %91 = vmatpush.msra.mxu0 %v61
    %92 = vmatpush.msra.mxu0 %v60
    %93 = vmatpush.msra.mxu0 %v59
    %94 = vmatmul.f32.gmra.mxu0 %v72
    %v95 = vpop.f32.mrf.mxu0
    %v96 = vadd.f32 %v68, %v95
    %97 = vdwg.mxu0
    %v98 = vmax.f32 %v96, 0.0
    %v99 = vld [vmem:[#allocation4] sm:$0xff]
    %v100 = vld [vmem:[#allocation4 + $0x8] sm:$0xff]
    %v101 = vld [vmem:[#allocation4 + $0x10] sm:$0xff]
    %v102 = vld [vmem:[#allocation4 + $0x18] sm:$0xff]
    %v103 = vld [vmem:[#allocation4 + $0x20] sm:$0xff]
    %v104 = vld [vmem:[#allocation4 + $0x28] sm:$0xff]
    %v105 = vld [vmem:[#allocation4 + $0x30] sm:$0xff]
    %v106 = vld [vmem:[#allocation4 + $0x38] sm:$0xff]
    %v107 = vld [vmem:[#allocation4 + $0x40] sm:$0xff]
    %v108 = vld [vmem:[#allocation4 + $0x48] sm:$0xff]
    %v109 = vld [vmem:[#allocation4 + $0x50] sm:$0xff]
    %v110 = vld [vmem:[#allocation4 + $0x58] sm:$0xff]
    %v111 = vld [vmem:[#allocation4 + $0x60] sm:$0xff]
    %v112 = vld [vmem:[#allocation4 + $0x68] sm:$0xff]
    %v113 = vld [vmem:[#allocation4 + $0x70] sm:$0xff]
    %v114 = vld [vmem:[#allocation4 + $0x78] sm:$0xff]
    %v115 = vld [vmem:[%s4] sm:$0x1]
    %v117 = vperm.slane %v115, 0
    %119 = vmatpush.msra.mxu0 %v114
    %120 = vmatpush.msra.mxu0 %v113
    %121 = vmatpush.msra.mxu0 %v112
    %122 = vmatpush.msra.mxu0 %v111
    %123 = vmatpush.msra.mxu0 %v110
    %124 = vmatpush.msra.mxu0 %v109
    %125 = vmatpush.msra.mxu0 %v108
    %126 = vmatpush.msra.mxu0 %v107
    %127 = vmatpush.msra.mxu0 %v106
    %128 = vmatpush.msra.mxu0 %v105
    %129 = vmatpush.msra.mxu0 %v104
    %130 = vmatpush.msra.mxu0 %v103
    %131 = vmatpush.msra.mxu0 %v102
    %132 = vmatpush.msra.mxu0 %v101
    %133 = vmatpush.msra.mxu0 %v100
    %134 = vmatpush.msra.mxu0 %v99
    %135 = vmatmul.f32.gmra.mxu0 %v98
    %v136 = vpop.f32.mrf.mxu0
    %v137 = vadd.f32 %v117, %v136
    %138 = vdwg.mxu0
    %v139 = vmax.f32 %v137, 0.0
    %v140 = vld [vmem:[%s5] sm:$0xff]
    %v141 = vld [vmem:[%s6] sm:$0xff]
    %143 = vset.pattern.permute.xlu0 0
    %144 = vperm.xlu0 %143, %v141
    %v145 = vpop.permute.xlu0 %144
    %147 = vmatpush.xpose.msra.mxu0 0.0
    %148 = vmatpush.xpose.msra.mxu0 0.0
    %149 = vmatpush.xpose.msra.mxu0 0.0
    %150 = vmatpush.xpose.msra.mxu0 0.0
    %151 = vmatpush.xpose.msra.mxu0 0.0
    %152 = vmatpush.xpose.msra.mxu0 0.0
    %153 = vmatpush.xpose.msra.mxu0 0.0
    %154 = vmatpush.xpose.msra.mxu0 0.0
    %155 = vmatpush.xpose.msra.mxu0 0.0
    %156 = vmatpush.xpose.msra.mxu0 0.0
    %157 = vmatpush.xpose.msra.mxu0 0.0
    %158 = vmatpush.xpose.msra.mxu0 0.0
    %159 = vmatpush.xpose.msra.mxu0 0.0
    %160 = vmatpush.xpose.msra.mxu0 0.0
    %161 = vmatpush.xpose.msra.mxu0 0.0
    %162 = vmatpush.xpose.msra.mxu0 %v139
    %163 = vmatmul.f32.gmra.mxu0 %v140
    %v164 = vpop.f32.mrf.mxu0
    %v165 = vadd.f32 %v145, %v164
    %166 = vdwg.mxu0
    %vm167 = vcmask 10240
    %168 = vst.msk [vmem:[%s7] sm:$0x7] %vm167, %v165
    // Predicated region
    $region38: #{tpu_custom_call.1} parent=1 // pred_check
      _
    $region39: #{tpu_custom_call.1} parent=1 // pred_check_branch
      %170 = sbr.rel (0) target = $region41
    $region40: #{tpu_custom_call.1} parent=1 // pred_region
      _
    $region41: #{tpu_custom_call.1} parent=1 // pred_fallthru
      _
    // Predicated region
    $region42: #{tpu_custom_call.1} parent=1 // pred_check
      _
    $region43: #{tpu_custom_call.1} parent=1 // pred_check_branch
      %172 = sbr.rel (0) target = $region45
    $region44: #{tpu_custom_call.1} parent=1 // pred_region
      _
    $region45: #{tpu_custom_call.1} parent=1 // pred_fallthru
      _
    %173 = vsyncpa [#allocation3], 1
    %174 = vsyncpa [#allocation5], 1

</llo_original>
